<compile_context>
chip_gen: v6e
topology: v6e:2x2x1
jax: 0.10.0
libtpu: 0.0.40
codegen_flags: <defaults>
</compile_context>

<pallas_src>
import jax
import jax.numpy as jnp
from jax.experimental import pallas as pl
from jax.experimental.pallas import tpu as pltpu


def _swish_kernel(beta_ref, x_ref, o_ref):
    # beta_ref: (1, 1) f32 scalar in SMEM; x_ref/o_ref: (tile_rows, W) VMEM tiles.
    beta = beta_ref[0, 0]                       # f32 scalar
    x = x_ref[...].astype(jnp.float32)          # compute in f32 regardless of input dtype
    y = x * jax.nn.sigmoid(beta * x)
    o_ref[...] = y.astype(o_ref.dtype)


def _sublane(dtype) -> int:
    # packed sublane tile height per dtype: f32 -> 8, bf16/f16 -> 16, int8/fp8 -> 32
    return {4: 8, 2: 16, 1: 32}.get(jnp.dtype(dtype).itemsize, 8)


def swish(x: jax.Array, beta: float) -> jax.Array:
    """Swish(x) = x * sigmoid(beta * x), computed in a Pallas TPU kernel."""
    orig_shape = x.shape
    dtype = x.dtype
    itemsize = jnp.dtype(dtype).itemsize
    sub = _sublane(dtype)

    n = x.size
    flat = x.reshape(-1)

    # Pick the widest lane-dense width that evenly divides n (no pad / no post-slice).
    width = None
    for w in (2048, 1024, 512, 256, 128):
        if n % w == 0:
            width = w
            break

    padded = False
    if width is None:
        # Ragged tail (n not a multiple of 128): pad once, slice once afterwards.
        width = 1024 if n >= 1024 else 128
        rows = pl.cdiv(n, width)
        flat = jnp.pad(flat, (0, rows * width - n))
        padded = True
    else:
        rows = n // width

    x2d = flat.reshape(rows, width)

    # Tile sizing: ~2 MiB per buffer (safe on v5e 16 MiB scoped / v7x 64 MiB physical
    # with double-buffered in + out), rows rounded to the dtype sublane tile.
    target_bytes = 2 * 1024 * 1024
    if rows <= sub:
        tile_rows = rows                         # full-extent block (always legal)
    else:
        tile_rows = min(max(1, target_bytes // (width * itemsize)), rows)
        tile_rows = max(sub, (tile_rows // sub) * sub)
        # Keep >= 2 grid steps when possible so both v7x TensorCores get work.
        if pl.cdiv(rows, tile_rows) < 2:
            tile_rows = max(sub, pl.cdiv(pl.cdiv(rows, 2), sub) * sub)

    grid = (pl.cdiv(rows, tile_rows),)           # partial last block is fine: elementwise,
                                                 # out-of-range writes are clipped by Pallas.

    beta_arr = jnp.array([[beta]], dtype=jnp.float32)

    out2d = pl.pallas_call(
        _swish_kernel,
        out_shape=jax.ShapeDtypeStruct((rows, width), dtype),
        grid_spec=pl.GridSpec(
            grid=grid,
            in_specs=[
                pl.BlockSpec(memory_space=pltpu.SMEM),           # beta scalar, untiled
                pl.BlockSpec((tile_rows, width), lambda i: (i, 0)),
            ],
            out_specs=pl.BlockSpec((tile_rows, width), lambda i: (i, 0)),
        ),
        compiler_params=pltpu.CompilerParams(
            dimension_semantics=("parallel",),
        ),
    )(beta_arr, x2d)

    if padded:
        out = out2d.reshape(-1)[:n].reshape(orig_shape)
    else:
        out = out2d.reshape(orig_shape)
    return out


if __name__ == "__main__":
    key = jax.random.PRNGKey(0)
    # Small NCHW input consistent with a conv-style model: batch=2, channels=4, 16x16 spatial.
    x = jax.random.normal(key, (2, 4, 16, 16), dtype=jnp.float32)
    beta = 1.5  # Swish(beta) — scalar "parameter" from __init__

    y = swish(x, beta)
    jax.block_until_ready(y)

    # Reference check against plain JAX
    y_ref = x * jax.nn.sigmoid(beta * x)
    assert y.shape == x.shape and y.dtype == x.dtype
    assert jnp.allclose(y, y_ref, atol=1e-6, rtol=1e-6), "mismatch vs reference"

    # Also exercise a ragged / larger shape to cover the partial-block path.
    x2 = jax.random.normal(jax.random.PRNGKey(1), (3, 5, 17, 19), dtype=jnp.float32)
    y2 = swish(x2, beta)
    jax.block_until_ready(y2)
    y2_ref = x2 * jax.nn.sigmoid(beta * x2)
    assert jnp.allclose(y2, y2_ref, atol=1e-6, rtol=1e-6), "mismatch vs reference (ragged)"

    print("KERNEL_OK")
</pallas_src>

<mosaic_0001>
module attributes {stable_mosaic.version = 11 : i64} {
  func.func @_swish_kernel(%arg0: i32, %arg1: memref<1x1xf32, #tpu.memory_space<smem>>, %arg2: memref<1x2048xf32, #tpu.memory_space<vmem>>, %arg3: memref<1x2048xf32, #tpu.memory_space<vmem>>) attributes {dimension_semantics = [#tpu.dimension_semantics<parallel>], iteration_bounds = array<i64: 1>, scalar_prefetch = 0 : i64, scratch_operands = 0 : i64, tpu.core_type = #tpu.core_type<tc>, window_params = [{transform_indices = @transform_0, window_bounds = array<i64: 1, 1>}, {transform_indices = @transform_1, window_bounds = array<i64: 1, 2048>}, {transform_indices = @transform_2, window_bounds = array<i64: 1, 2048>}]} {
    %c0 = arith.constant 0 : index
    %c0_0 = arith.constant 0 : index
    %0 = memref.load %arg1[%c0, %c0_0] : memref<1x1xf32, #tpu.memory_space<smem>>
    %c0_1 = arith.constant 0 : index
    %c0_2 = arith.constant 0 : index
    %1 = vector.load %arg2[%c0_1, %c0_2] : memref<1x2048xf32, #tpu.memory_space<vmem>>, vector<1x2048xf32>
    %2 = vector.broadcast %0 : f32 to vector<1x2048xf32>
    %3 = arith.mulf %2, %1 : vector<1x2048xf32>
    %4 = arith.negf %3 : vector<1x2048xf32>
    %5 = math.exp %4 : vector<1x2048xf32>
    %cst = arith.constant 1.000000e+00 : f32
    %6 = vector.broadcast %cst : f32 to vector<1x2048xf32>
    %7 = arith.addf %6, %5 : vector<1x2048xf32>
    %8 = arith.divf %6, %7 : vector<1x2048xf32>
    %9 = arith.mulf %1, %8 : vector<1x2048xf32>
    %c0_3 = arith.constant 0 : index
    %c0_4 = arith.constant 0 : index
    %10 = vector.load %arg3[%c0_3, %c0_4] : memref<1x2048xf32, #tpu.memory_space<vmem>>, vector<1x2048xf32>
    tpu.vector_store %arg3[%c0_3, %c0_4], %9 {strides = array<i32>} : memref<1x2048xf32, #tpu.memory_space<vmem>>, vector<1x2048xf32>,
    return
  }
  func.func @transform_0(%arg0: i32) -> (i32, i32) {
    %c0_i32 = arith.constant 0 : i32
    %c0_i32_0 = arith.constant 0 : i32
    %c0_i32_1 = arith.constant 0 : i32
    return %c0_i32, %c0_i32_0 : i32, i32
  }
  func.func @transform_1(%arg0: i32) -> (i32, i32) {
    %c0_i32 = arith.constant 0 : i32
    %c0_i32_0 = arith.constant 0 : i32
    return %arg0, %c0_i32 : i32, i32
  }
  func.func @transform_2(%arg0: i32) -> (i32, i32) {
    %c0_i32 = arith.constant 0 : i32
    %c0_i32_0 = arith.constant 0 : i32
    return %arg0, %c0_i32 : i32, i32
  }
}

</mosaic_0001>

<llo_original>
// kernel: tpu_custom_call.1
$region0: #{tpu_custom_call.1}
  #allocation0 [shape = 'u32[]', space=smem, size = 0x4, offset = 0x4, fixed_abs, tag = 'smem constant byte address 0x4 - core index']
  #allocation1 [shape = 'u32[144,128]{1,0:T(1,128)}', space=vmem, size = 0x12000, scoped, tag = 'internal scratch']
  #allocation2 [shape = 'f32[1,1]{1,0:T(1,128)S(6)}', space=smem, size = 0x200, scoped, tag = 'scoped memory for tpu_custom_call.1']
  %s0 = inlined_call_operand.<no memory space> [shape: f32[1,1], index: 0, kind: input, shape index: {}]
  %s1 = inlined_call_operand.hbm [shape: f32[1,2048], index: 1, kind: input, shape index: {}]
  %s2 = inlined_call_operand.hbm [shape: f32[1,2048], index: 2, kind: output, shape index: {}]
  %s3 = sld [smem:[#allocation0]]
  $region22: #{tpu_custom_call.1} parent=0
    _
  %s5 = ssub.s32 1, %s3
  %s6 = scalar_select 0, %s5, %s3
  %7 = sst [smem:[#allocation2]] %s0
  $region1: #{tpu_custom_call.1} parent=0
    #allocation3 [shape = 'u8[8192]{0}', space=vmem, size = 0x2000, scoped, tag = 'input window, operand 1, single buffered']
    #allocation4 [shape = 's32[1]{0}', space=sflag, size = 0x4, scoped, tag = 'scoped memory for tpu_custom_call.1']
    #allocation5 [shape = 's32[1]{0}', space=sflag, size = 0x4, scoped, tag = 'scoped memory for tpu_custom_call.1']
    #allocation6 [shape = 'u8[8192]{0}', space=vmem, size = 0x2000, scoped, tag = 'output window, operand 0, single buffered']
    %8 = vsyncpa [#allocation4], 0
    %9 = vsyncpa [#allocation5], 0
    // Predicated region
    $region2: #{tpu_custom_call.1} parent=1 // pred_check
      _
    $region3: #{tpu_custom_call.1} parent=1 // pred_check_branch
      %11 = sbr.rel (0) target = $region5
    $region4: #{tpu_custom_call.1} parent=1 // pred_region
      _
    $region5: #{tpu_custom_call.1} parent=1 // pred_fallthru
      _
    // Predicated region
    $region6: #{tpu_custom_call.1} parent=1 // pred_check
      _
    $region7: #{tpu_custom_call.1} parent=1 // pred_check_branch
      %13 = sbr.rel (0) target = $region9
    $region8: #{tpu_custom_call.1} parent=1 // pred_region
      %s15 = ssub.s32 256, 256
      %16 = vsyncadd [#allocation4], %s15
      %s18 = sshll.u32 [#allocation3], 4
      %s19 = int_to_ptr.vmem [resolvable:$true] %s18
      %21 = dma.hbm_to_vmem [thread:$0]  %s1, 256, %s19, [#allocation4]
    $region9: #{tpu_custom_call.1} parent=1 // pred_fallthru
      _
    // Predicated region
    $region10: #{tpu_custom_call.1} parent=1 // pred_check
      _
    $region11: #{tpu_custom_call.1} parent=1 // pred_check_branch
      %23 = sbr.rel (0) target = $region13
    $region12: #{tpu_custom_call.1} parent=1 // pred_region
      %24 = dma.done [#allocation4], 256
    $region13: #{tpu_custom_call.1} parent=1 // pred_fallthru
      _
    %s25 = sld [smem:[#allocation2]]
    %v26 = vld [vmem:[#allocation3] sm:$0xff]
    %v27 = vld [vmem:[#allocation3 + $0x8] sm:$0xff]
    %v28 = vstv %s25
    %v29 = vmul.f32 %v28, %v26
    %v30 = vmul.f32 %v28, %v27
    %v31 = vxor.u32 %v29, 2147483648
    %v32 = vxor.u32 %v30, 2147483648
    %v33 = vmul.f32 %v31, 1.442695
    %v34 = vpow.pop %v33
    %v35 = vmul.f32 %v32, 1.442695
    %v36 = vpow.pop %v35
    %v37 = vadd.f32 %v34, 1.0
    %v38 = vadd.f32 %v36, 1.0
    %v39 = vrcp.pop %v37
    %v40 = vmul.f32 1.0, %v39
    %v41 = vrcp.pop %v38
    %v42 = vmul.f32 1.0, %v41
    %v43 = vmul.f32 %v26, %v40
    %v44 = vmul.f32 %v27, %v42
    %45 = vst [vmem:[#allocation6] sm:$0xff] %v43
    %46 = vst [vmem:[#allocation6 + $0x8] sm:$0xff] %v44
    // Predicated region
    $region14: #{tpu_custom_call.1} parent=1 // pred_check
      _
    $region15: #{tpu_custom_call.1} parent=1 // pred_check_branch
      %48 = sbr.rel (0) target = $region17
    $region16: #{tpu_custom_call.1} parent=1 // pred_region
      %s50 = ssub.s32 256, 256
      %51 = vsyncadd [#allocation5], %s50
      %s53 = sshll.u32 [#allocation6], 4
      %s54 = int_to_ptr.vmem [resolvable:$true] %s53
      %56 = dma.vmem_to_hbm [thread:$0]  %s54, 256, %s2, [#allocation5]
    $region17: #{tpu_custom_call.1} parent=1 // pred_fallthru
      _
    // Predicated region
    $region18: #{tpu_custom_call.1} parent=1 // pred_check
      _
    $region19: #{tpu_custom_call.1} parent=1 // pred_check_branch
      %58 = sbr.rel (0) target = $region21
    $region20: #{tpu_custom_call.1} parent=1 // pred_region
      %59 = dma.done [#allocation5], 256
    $region21: #{tpu_custom_call.1} parent=1 // pred_fallthru
      _
    %60 = vsyncpa [#allocation4], 1
    %61 = vsyncpa [#allocation5], 1

</llo_original>
